<compile_context>
chip_gen: v7x
topology: tpu7x:2x2x1
jax: 0.10.0
libtpu: 0.0.40
codegen_flags: <defaults>
</compile_context>

<pallas_src>
import functools

import jax
import jax.numpy as jnp
import numpy as np
from jax.experimental import pallas as pl
from jax.experimental.pallas import tpu as pltpu

BN_EPS = 1e-5


def _make_dense_block_kernel(num_convs, c0, nc, c_pad, nl):
    """Build the fused DenseBlock kernel for static (num_convs, c0, nc)."""

    def kernel(*refs):
        x_ref = refs[0]                     # (c0, NL)
        lmask_ref = refs[1]                 # (1, NL) 0.0 where l == 0 in a sample
        rmask_ref = refs[2]                 # (1, NL) 0.0 where l == L-1 in a sample
        block_refs = refs[3:3 + 4 * num_convs]
        out_ref = refs[3 + 4 * num_convs]   # (c_total, NL) -- also the work buffer
        hcat_ref = refs[4 + 4 * num_convs]  # (3*c_pad, NL) packed-tap scratch

        # Zero the packed-tap scratch once; the zero-padded weight columns make
        # the alignment rows harmless, but they must hold finite values.
        hcat_ref[...] = jnp.zeros_like(hcat_ref)

        # Seed the dense activation buffer with the input channels.
        out_ref[0:c0, :] = x_ref[...]

        lmask = lmask_ref[...]
        rmask = rmask_ref[...]

        # Static unroll over blocks (channel count grows per block, so shapes
        # differ and a fori_loop is not applicable).
        for i in range(num_convs):
            gamma = block_refs[4 * i + 0][...]   # (cin, 1)
            beta = block_refs[4 * i + 1][...]    # (cin, 1)
            wcat = block_refs[4 * i + 2][...]    # (nc, 3*c_pad) packed taps
            bias = block_refs[4 * i + 3][...]    # (nc, 1)
            cin = c0 + i * nc

            h = out_ref[0:cin, :]                # (cin, NL) dense input so far

            # ---- BatchNorm1d (training-mode batch stats, biased variance) ----
            mean = jnp.mean(h, axis=1, keepdims=True)
            var = jnp.mean(jnp.square(h - mean), axis=1, keepdims=True)
            hn = (h - mean) * jax.lax.rsqrt(var + BN_EPS)
            hn = hn * gamma + beta

            # ---- ReLU ----
            hn = jnp.maximum(hn, 0.0)

            # ---- Conv1d k=3 pad=1: taps via XLU lane rotations + masks ----
            left = pltpu.roll(hn, 1, axis=1) * lmask        # h[:, l-1] (0 at l==0)
            right = pltpu.roll(hn, nl - 1, axis=1) * rmask  # h[:, l+1] (0 at l==L-1)

            hcat_ref[0:cin, :] = left
            hcat_ref[c_pad:c_pad + cin, :] = hn
            hcat_ref[2 * c_pad:2 * c_pad + cin, :] = right

            # Single MXU matmul per block, f32 accumulation.
            y = jnp.dot(wcat, hcat_ref[...],
                        preferred_element_type=jnp.float32) + bias

            # Dense concatenation: append the new channels in place.
            out_ref[cin:cin + nc, :] = y

    return kernel


def dense_block_pallas(x, params, num_channels):
    """Fused DenseBlock forward. x: (N, C0, L) -> (N, C0 + num_convs*nc, L)."""
    N, C0, L = x.shape
    NL = N * L
    nc = num_channels
    num_convs = len(params)
    C_total = C0 + num_convs * nc
    max_cin = C0 + (num_convs - 1) * nc
    c_pad = ((max_cin + 7) // 8) * 8          # 8-aligned tap segments in scratch

    # (N, C0, L) -> (C0, N*L): channels on sublanes, batch*length on lanes.
    x2 = jnp.transpose(x, (1, 0, 2)).reshape(C0, NL).astype(jnp.float32)

    # Per-sample boundary masks for the shifted taps (flat index j = n*L + l).
    pos = np.arange(NL) % L
    lmask = jnp.asarray(pos != 0, jnp.float32).reshape(1, NL)
    rmask = jnp.asarray(pos != L - 1, jnp.float32).reshape(1, NL)

    inputs = [x2, lmask, rmask]
    for i, p in enumerate(params):
        cin = C0 + i * nc
        gamma = p["gamma"].reshape(cin, 1).astype(jnp.float32)
        beta = p["beta"].reshape(cin, 1).astype(jnp.float32)
        w = p["w"].astype(jnp.float32)                         # (nc, cin, 3)
        wcat = jnp.zeros((nc, 3 * c_pad), jnp.float32)
        wcat = wcat.at[:, 0:cin].set(w[:, :, 0])               # tap -> h[l-1]
        wcat = wcat.at[:, c_pad:c_pad + cin].set(w[:, :, 1])   # tap -> h[l]
        wcat = wcat.at[:, 2 * c_pad:2 * c_pad + cin].set(w[:, :, 2])  # h[l+1]
        bias = p["b"].reshape(nc, 1).astype(jnp.float32)
        inputs += [gamma, beta, wcat, bias]

    vmem = functools.partial(pl.BlockSpec, memory_space=pltpu.MemorySpace.VMEM)
    out = pl.pallas_call(
        _make_dense_block_kernel(num_convs, C0, nc, c_pad, NL),
        out_shape=jax.ShapeDtypeStruct((C_total, NL), jnp.float32),
        in_specs=[vmem() for _ in inputs],
        out_specs=vmem(),
        scratch_shapes=[pltpu.VMEM((3 * c_pad, NL), jnp.float32)],
        compiler_params=pltpu.CompilerParams(
            vmem_limit_bytes=32 * 1024 * 1024),
    )(*inputs)

    # (C_total, N*L) -> (N, C_total, L)
    return out.reshape(C_total, N, L).transpose(1, 0, 2)


def dense_block_forward(x, params, num_channels):
    """DenseBlock.forward: X = cat([X, blk(X)], dim=1) for every block (fused)."""
    return dense_block_pallas(x, params, num_channels)


def init_dense_block_params(key, num_convs, input_channels, num_channels):
    """Deterministic parameter init (PyTorch-like defaults)."""
    params = []
    for i in range(num_convs):
        cin = num_channels * i + input_channels
        co = num_channels
        key, kw, kb = jax.random.split(key, 3)
        fan_in = cin * 3
        bound = 1.0 / np.sqrt(fan_in)
        w = jax.random.uniform(kw, (co, cin, 3), jnp.float32, -bound, bound)
        b = jax.random.uniform(kb, (co,), jnp.float32, -bound, bound)
        gamma = jnp.ones((cin,), jnp.float32)   # BN weight default
        beta = jnp.zeros((cin,), jnp.float32)   # BN bias default
        params.append(dict(gamma=gamma, beta=beta, w=w, b=b))
    return params


# ---- pure-JAX reference (for a silent sanity check) ----
def _ref_forward(x, params):
    for p in params:
        mean = jnp.mean(x, axis=(0, 2), keepdims=True)
        var = jnp.mean(jnp.square(x - mean), axis=(0, 2), keepdims=True)
        h = (x - mean) / jnp.sqrt(var + BN_EPS)
        h = h * p["gamma"][None, :, None] + p["beta"][None, :, None]
        h = jnp.maximum(h, 0.0)
        y = jax.lax.conv_general_dilated(
            h, p["w"], window_strides=(1,), padding=((1, 1),),
            dimension_numbers=("NCH", "OIH", "NCH"))
        y = y + p["b"][None, :, None]
        x = jnp.concatenate([x, y], axis=1)
    return x


if __name__ == "__main__":
    num_convs = 2
    input_channels = 4
    num_channels = 4
    N, L = 2, 16

    key = jax.random.PRNGKey(0)
    key, kx = jax.random.split(key)
    x = jax.random.normal(kx, (N, input_channels, L), jnp.float32)

    params = init_dense_block_params(key, num_convs, input_channels, num_channels)

    out = dense_block_forward(x, params, num_channels)
    out = jax.block_until_ready(out)

    expected_channels = input_channels + num_convs * num_channels
    assert out.shape == (N, expected_channels, L), out.shape

    ref = jax.block_until_ready(_ref_forward(x, params))
    np.testing.assert_allclose(np.asarray(out), np.asarray(ref),
                               rtol=1e-4, atol=1e-4)

    print("KERNEL_OK")
</pallas_src>

<mosaic_0001>
module attributes {stable_mosaic.version = 11 : i64} {
  func.func @kernel(%arg0: memref<4x32xf32, #tpu.memory_space<vmem>>, %arg1: memref<1x32xf32, #tpu.memory_space<vmem>>, %arg2: memref<1x32xf32, #tpu.memory_space<vmem>>, %arg3: memref<4x1xf32, #tpu.memory_space<vmem>>, %arg4: memref<4x1xf32, #tpu.memory_space<vmem>>, %arg5: memref<4x24xf32, #tpu.memory_space<vmem>>, %arg6: memref<4x1xf32, #tpu.memory_space<vmem>>, %arg7: memref<8x1xf32, #tpu.memory_space<vmem>>, %arg8: memref<8x1xf32, #tpu.memory_space<vmem>>, %arg9: memref<4x24xf32, #tpu.memory_space<vmem>>, %arg10: memref<4x1xf32, #tpu.memory_space<vmem>>, %arg11: memref<12x32xf32, #tpu.memory_space<vmem>>, %arg12: memref<24x32xf32, #tpu.memory_space<vmem>>) attributes {dimension_semantics = [], scalar_prefetch = 0 : i64, scratch_operands = 1 : i64, tpu.core_type = #tpu.core_type<tc>} {
    %cst = arith.constant 0.000000e+00 : f32
    %0 = vector.broadcast %cst : f32 to vector<24x32xf32>
    %c0 = arith.constant 0 : index
    %c0_0 = arith.constant 0 : index
    %1 = vector.load %arg12[%c0, %c0_0] : memref<24x32xf32, #tpu.memory_space<vmem>>, vector<24x32xf32>
    tpu.vector_store %arg12[%c0, %c0_0], %0 {strides = array<i32>} : memref<24x32xf32, #tpu.memory_space<vmem>>, vector<24x32xf32>,
    %c0_1 = arith.constant 0 : index
    %c0_2 = arith.constant 0 : index
    %2 = vector.load %arg0[%c0_1, %c0_2] : memref<4x32xf32, #tpu.memory_space<vmem>>, vector<4x32xf32>
    %c0_3 = arith.constant 0 : index
    %c0_4 = arith.constant 0 : index
    %3 = vector.load %arg11[%c0_3, %c0_4] : memref<12x32xf32, #tpu.memory_space<vmem>>, vector<4x32xf32>
    tpu.vector_store %arg11[%c0_3, %c0_4], %2 {strides = array<i32>} : memref<12x32xf32, #tpu.memory_space<vmem>>, vector<4x32xf32>,
    %c0_5 = arith.constant 0 : index
    %c0_6 = arith.constant 0 : index
    %4 = vector.load %arg1[%c0_5, %c0_6] : memref<1x32xf32, #tpu.memory_space<vmem>>, vector<1x32xf32>
    %c0_7 = arith.constant 0 : index
    %c0_8 = arith.constant 0 : index
    %5 = vector.load %arg2[%c0_7, %c0_8] : memref<1x32xf32, #tpu.memory_space<vmem>>, vector<1x32xf32>
    %c0_9 = arith.constant 0 : index
    %c0_10 = arith.constant 0 : index
    %6 = vector.load %arg3[%c0_9, %c0_10] : memref<4x1xf32, #tpu.memory_space<vmem>>, vector<4x1xf32>
    %c0_11 = arith.constant 0 : index
    %c0_12 = arith.constant 0 : index
    %7 = vector.load %arg4[%c0_11, %c0_12] : memref<4x1xf32, #tpu.memory_space<vmem>>, vector<4x1xf32>
    %c0_13 = arith.constant 0 : index
    %c0_14 = arith.constant 0 : index
    %8 = vector.load %arg5[%c0_13, %c0_14] : memref<4x24xf32, #tpu.memory_space<vmem>>, vector<4x24xf32>
    %c0_15 = arith.constant 0 : index
    %c0_16 = arith.constant 0 : index
    %9 = vector.load %arg6[%c0_15, %c0_16] : memref<4x1xf32, #tpu.memory_space<vmem>>, vector<4x1xf32>
    %c0_17 = arith.constant 0 : index
    %c0_18 = arith.constant 0 : index
    %10 = vector.load %arg11[%c0_17, %c0_18] : memref<12x32xf32, #tpu.memory_space<vmem>>, vector<4x32xf32>
    %cst_19 = arith.constant dense<0.000000e+00> : vector<4xf32>
    %11 = vector.multi_reduction <add>, %10, %cst_19 [1] : vector<4x32xf32> to vector<4xf32>
    %12 = vector.shape_cast %11 : vector<4xf32> to vector<4x1xf32>
    %cst_20 = arith.constant 3.200000e+01 : f32
    %13 = vector.broadcast %cst_20 : f32 to vector<4x1xf32>
    %14 = arith.divf %12, %13 : vector<4x1xf32>
    %15 = vector.broadcast %14 : vector<4x1xf32> to vector<4x32xf32>
    %16 = arith.subf %10, %15 : vector<4x32xf32>
    %17 = arith.mulf %16, %16 : vector<4x32xf32>
    %cst_21 = arith.constant dense<0.000000e+00> : vector<4xf32>
    %18 = vector.multi_reduction <add>, %17, %cst_21 [1] : vector<4x32xf32> to vector<4xf32>
    %19 = vector.shape_cast %18 : vector<4xf32> to vector<4x1xf32>
    %cst_22 = arith.constant 3.200000e+01 : f32
    %20 = vector.broadcast %cst_22 : f32 to vector<4x1xf32>
    %21 = arith.divf %19, %20 : vector<4x1xf32>
    %22 = vector.broadcast %14 : vector<4x1xf32> to vector<4x32xf32>
    %23 = arith.subf %10, %22 : vector<4x32xf32>
    %cst_23 = arith.constant 9.99999974E-6 : f32
    %24 = vector.broadcast %cst_23 : f32 to vector<4x1xf32>
    %25 = arith.addf %21, %24 : vector<4x1xf32>
    %26 = math.rsqrt %25 : vector<4x1xf32>
    %27 = vector.broadcast %26 : vector<4x1xf32> to vector<4x32xf32>
    %28 = arith.mulf %23, %27 : vector<4x32xf32>
    %29 = vector.broadcast %6 : vector<4x1xf32> to vector<4x32xf32>
    %30 = arith.mulf %28, %29 : vector<4x32xf32>
    %31 = vector.broadcast %7 : vector<4x1xf32> to vector<4x32xf32>
    %32 = arith.addf %30, %31 : vector<4x32xf32>
    %cst_24 = arith.constant 0.000000e+00 : f32
    %33 = vector.broadcast %cst_24 : f32 to vector<4x32xf32>
    %34 = arith.maximumf %32, %33 : vector<4x32xf32>
    %c1_i32 = arith.constant 1 : i32
    %35 = tpu.dynamic_rotate %34 by %c1_i32 dim 1 : vector<4x32xf32>, i32 -> vector<4x32xf32>
    %36 = vector.broadcast %4 : vector<1x32xf32> to vector<4x32xf32>
    %37 = arith.mulf %35, %36 : vector<4x32xf32>
    %c31_i32 = arith.constant 31 : i32
    %38 = tpu.dynamic_rotate %34 by %c31_i32 dim 1 : vector<4x32xf32>, i32 -> vector<4x32xf32>
    %39 = vector.broadcast %5 : vector<1x32xf32> to vector<4x32xf32>
    %40 = arith.mulf %38, %39 : vector<4x32xf32>
    %c0_25 = arith.constant 0 : index
    %c0_26 = arith.constant 0 : index
    %41 = vector.load %arg12[%c0_25, %c0_26] : memref<24x32xf32, #tpu.memory_space<vmem>>, vector<4x32xf32>
    tpu.vector_store %arg12[%c0_25, %c0_26], %37 {strides = array<i32>} : memref<24x32xf32, #tpu.memory_space<vmem>>, vector<4x32xf32>,
    %c8 = arith.constant 8 : index
    %c0_27 = arith.constant 0 : index
    %42 = vector.load %arg12[%c8, %c0_27] : memref<24x32xf32, #tpu.memory_space<vmem>>, vector<4x32xf32>
    tpu.vector_store %arg12[%c8, %c0_27], %34 {strides = array<i32>} : memref<24x32xf32, #tpu.memory_space<vmem>>, vector<4x32xf32>,
    %c16 = arith.constant 16 : index
    %c0_28 = arith.constant 0 : index
    %43 = vector.load %arg12[%c16, %c0_28] : memref<24x32xf32, #tpu.memory_space<vmem>>, vector<4x32xf32>
    tpu.vector_store %arg12[%c16, %c0_28], %40 {strides = array<i32>} : memref<24x32xf32, #tpu.memory_space<vmem>>, vector<4x32xf32>,
    %c0_29 = arith.constant 0 : index
    %c0_30 = arith.constant 0 : index
    %44 = vector.load %arg12[%c0_29, %c0_30] : memref<24x32xf32, #tpu.memory_space<vmem>>, vector<24x32xf32>
    %cst_31 = arith.constant dense<0.000000e+00> : vector<4x32xf32>
    %45 = tpu.matmul %8, %44, %cst_31 {dimension_numbers = #tpu.dot_dimension_numbers<[1], [0], [0], [1], [0, 0, 1, 1], [], []>} : vector<4x24xf32>, vector<24x32xf32>, vector<4x32xf32> -> vector<4x32xf32>
    %46 = vector.broadcast %9 : vector<4x1xf32> to vector<4x32xf32>
    %47 = arith.addf %45, %46 : vector<4x32xf32>
    %c4 = arith.constant 4 : index
    %c0_32 = arith.constant 0 : index
    %48 = vector.load %arg11[%c4, %c0_32] : memref<12x32xf32, #tpu.memory_space<vmem>>, vector<4x32xf32>
    tpu.vector_store %arg11[%c4, %c0_32], %47 {strides = array<i32>} : memref<12x32xf32, #tpu.memory_space<vmem>>, vector<4x32xf32>,
    %c0_33 = arith.constant 0 : index
    %c0_34 = arith.constant 0 : index
    %49 = vector.load %arg7[%c0_33, %c0_34] : memref<8x1xf32, #tpu.memory_space<vmem>>, vector<8x1xf32>
    %c0_35 = arith.constant 0 : index
    %c0_36 = arith.constant 0 : index
    %50 = vector.load %arg8[%c0_35, %c0_36] : memref<8x1xf32, #tpu.memory_space<vmem>>, vector<8x1xf32>
    %c0_37 = arith.constant 0 : index
    %c0_38 = arith.constant 0 : index
    %51 = vector.load %arg9[%c0_37, %c0_38] : memref<4x24xf32, #tpu.memory_space<vmem>>, vector<4x24xf32>
    %c0_39 = arith.constant 0 : index
    %c0_40 = arith.constant 0 : index
    %52 = vector.load %arg10[%c0_39, %c0_40] : memref<4x1xf32, #tpu.memory_space<vmem>>, vector<4x1xf32>
    %c0_41 = arith.constant 0 : index
    %c0_42 = arith.constant 0 : index
    %53 = vector.load %arg11[%c0_41, %c0_42] : memref<12x32xf32, #tpu.memory_space<vmem>>, vector<8x32xf32>
    %cst_43 = arith.constant dense<0.000000e+00> : vector<8xf32>
    %54 = vector.multi_reduction <add>, %53, %cst_43 [1] : vector<8x32xf32> to vector<8xf32>
    %55 = vector.shape_cast %54 : vector<8xf32> to vector<8x1xf32>
    %cst_44 = arith.constant 3.200000e+01 : f32
    %56 = vector.broadcast %cst_44 : f32 to vector<8x1xf32>
    %57 = arith.divf %55, %56 : vector<8x1xf32>
    %58 = vector.broadcast %57 : vector<8x1xf32> to vector<8x32xf32>
    %59 = arith.subf %53, %58 : vector<8x32xf32>
    %60 = arith.mulf %59, %59 : vector<8x32xf32>
    %cst_45 = arith.constant dense<0.000000e+00> : vector<8xf32>
    %61 = vector.multi_reduction <add>, %60, %cst_45 [1] : vector<8x32xf32> to vector<8xf32>
    %62 = vector.shape_cast %61 : vector<8xf32> to vector<8x1xf32>
    %cst_46 = arith.constant 3.200000e+01 : f32
    %63 = vector.broadcast %cst_46 : f32 to vector<8x1xf32>
    %64 = arith.divf %62, %63 : vector<8x1xf32>
    %65 = vector.broadcast %57 : vector<8x1xf32> to vector<8x32xf32>
    %66 = arith.subf %53, %65 : vector<8x32xf32>
    %cst_47 = arith.constant 9.99999974E-6 : f32
    %67 = vector.broadcast %cst_47 : f32 to vector<8x1xf32>
    %68 = arith.addf %64, %67 : vector<8x1xf32>
    %69 = math.rsqrt %68 : vector<8x1xf32>
    %70 = vector.broadcast %69 : vector<8x1xf32> to vector<8x32xf32>
    %71 = arith.mulf %66, %70 : vector<8x32xf32>
    %72 = vector.broadcast %49 : vector<8x1xf32> to vector<8x32xf32>
    %73 = arith.mulf %71, %72 : vector<8x32xf32>
    %74 = vector.broadcast %50 : vector<8x1xf32> to vector<8x32xf32>
    %75 = arith.addf %73, %74 : vector<8x32xf32>
    %cst_48 = arith.constant 0.000000e+00 : f32
    %76 = vector.broadcast %cst_48 : f32 to vector<8x32xf32>
    %77 = arith.maximumf %75, %76 : vector<8x32xf32>
    %c1_i32_49 = arith.constant 1 : i32
    %78 = tpu.dynamic_rotate %77 by %c1_i32_49 dim 1 : vector<8x32xf32>, i32 -> vector<8x32xf32>
    %79 = vector.broadcast %4 : vector<1x32xf32> to vector<8x32xf32>
    %80 = arith.mulf %78, %79 : vector<8x32xf32>
    %c31_i32_50 = arith.constant 31 : i32
    %81 = tpu.dynamic_rotate %77 by %c31_i32_50 dim 1 : vector<8x32xf32>, i32 -> vector<8x32xf32>
    %82 = vector.broadcast %5 : vector<1x32xf32> to vector<8x32xf32>
    %83 = arith.mulf %81, %82 : vector<8x32xf32>
    %c0_51 = arith.constant 0 : index
    %c0_52 = arith.constant 0 : index
    %84 = vector.load %arg12[%c0_51, %c0_52] : memref<24x32xf32, #tpu.memory_space<vmem>>, vector<8x32xf32>
    tpu.vector_store %arg12[%c0_51, %c0_52], %80 {strides = array<i32>} : memref<24x32xf32, #tpu.memory_space<vmem>>, vector<8x32xf32>,
    %c8_53 = arith.constant 8 : index
    %c0_54 = arith.constant 0 : index
    %85 = vector.load %arg12[%c8_53, %c0_54] : memref<24x32xf32, #tpu.memory_space<vmem>>, vector<8x32xf32>
    tpu.vector_store %arg12[%c8_53, %c0_54], %77 {strides = array<i32>} : memref<24x32xf32, #tpu.memory_space<vmem>>, vector<8x32xf32>,
    %c16_55 = arith.constant 16 : index
    %c0_56 = arith.constant 0 : index
    %86 = vector.load %arg12[%c16_55, %c0_56] : memref<24x32xf32, #tpu.memory_space<vmem>>, vector<8x32xf32>
    tpu.vector_store %arg12[%c16_55, %c0_56], %83 {strides = array<i32>} : memref<24x32xf32, #tpu.memory_space<vmem>>, vector<8x32xf32>,
    %c0_57 = arith.constant 0 : index
    %c0_58 = arith.constant 0 : index
    %87 = vector.load %arg12[%c0_57, %c0_58] : memref<24x32xf32, #tpu.memory_space<vmem>>, vector<24x32xf32>
    %cst_59 = arith.constant dense<0.000000e+00> : vector<4x32xf32>
    %88 = tpu.matmul %51, %87, %cst_59 {dimension_numbers = #tpu.dot_dimension_numbers<[1], [0], [0], [1], [0, 0, 1, 1], [], []>} : vector<4x24xf32>, vector<24x32xf32>, vector<4x32xf32> -> vector<4x32xf32>
    %89 = vector.broadcast %52 : vector<4x1xf32> to vector<4x32xf32>
    %90 = arith.addf %88, %89 : vector<4x32xf32>
    %c8_60 = arith.constant 8 : index
    %c0_61 = arith.constant 0 : index
    %91 = vector.load %arg11[%c8_60, %c0_61] : memref<12x32xf32, #tpu.memory_space<vmem>>, vector<4x32xf32>
    tpu.vector_store %arg11[%c8_60, %c0_61], %90 {strides = array<i32>} : memref<12x32xf32, #tpu.memory_space<vmem>>, vector<4x32xf32>,
    return
  }
}

</mosaic_0001>

<llo_original>
// kernel: tpu_custom_call.1
$region0: #{tpu_custom_call.1}
  #allocation0 [shape = 'u32[]', space=smem, size = 0x4, offset = 0x4, fixed_abs, tag = 'smem constant byte address 0x4 - core index']
  #allocation1 [shape = 'u32[144,128]{1,0:T(1,128)}', space=vmem, size = 0x12000, scoped, tag = 'internal scratch']
  #allocation2 [shape = 'f32[24,32]{1,0:T(8,128)}', space=vmem, size = 0x3000, scoped, tag = 'scratch operand']
  %s0 = inlined_call_operand.vmem [shape: f32[4,32], index: 0, kind: input, shape index: {}]
  %s1 = inlined_call_operand.vmem [shape: f32[1,32], index: 1, kind: input, shape index: {}]
  %s2 = inlined_call_operand.vmem [shape: f32[1,32], index: 2, kind: input, shape index: {}]
  %s3 = inlined_call_operand.vmem [shape: f32[4,1], index: 3, kind: input, shape index: {}]
  %s4 = inlined_call_operand.vmem [shape: f32[4,1], index: 4, kind: input, shape index: {}]
  %s5 = inlined_call_operand.vmem [shape: f32[4,24], index: 5, kind: input, shape index: {}]
  %s6 = inlined_call_operand.vmem [shape: f32[4,1], index: 6, kind: input, shape index: {}]
  %s7 = inlined_call_operand.vmem [shape: f32[8,1], index: 7, kind: input, shape index: {}]
  %s8 = inlined_call_operand.vmem [shape: f32[8,1], index: 8, kind: input, shape index: {}]
  %s9 = inlined_call_operand.vmem [shape: f32[4,24], index: 9, kind: input, shape index: {}]
  %s10 = inlined_call_operand.vmem [shape: f32[4,1], index: 10, kind: input, shape index: {}]
  %s11 = inlined_call_operand.hbm [shape: f32[12,32], index: 11, kind: output, shape index: {}]
  %s12 = sld [smem:[#allocation0]]
  $region54: #{tpu_custom_call.1} parent=0
    _
  %s14 = ssub.s32 1, %s12
  %s15 = scalar_select 0, %s14, %s12
  $region1: #{tpu_custom_call.1} parent=0
    #allocation3 [shape = 'u8[8192]{0}', space=vmem, size = 0x2000, scoped, tag = 'output window, operand 0, single buffered']
    #allocation4 [shape = 's32[1]{0}', space=sflag, size = 0x4, scoped, tag = 'scoped memory for tpu_custom_call.1']
    %16 = vsyncpa [#allocation4], 0
    // Predicated region
    $region2: #{tpu_custom_call.1} parent=1 // pred_check
      _
    $region3: #{tpu_custom_call.1} parent=1 // pred_check_branch
      %18 = sbr.rel (0) target = $region5
    $region4: #{tpu_custom_call.1} parent=1 // pred_region
      _
    $region5: #{tpu_custom_call.1} parent=1 // pred_fallthru
      _
    // Predicated region
    $region6: #{tpu_custom_call.1} parent=1 // pred_check
      _
    $region7: #{tpu_custom_call.1} parent=1 // pred_check_branch
      %20 = sbr.rel (0) target = $region9
    $region8: #{tpu_custom_call.1} parent=1 // pred_region
      _
    $region9: #{tpu_custom_call.1} parent=1 // pred_fallthru
      _
    // Predicated region
    $region10: #{tpu_custom_call.1} parent=1 // pred_check
      _
    $region11: #{tpu_custom_call.1} parent=1 // pred_check_branch
      %22 = sbr.rel (0) target = $region13
    $region12: #{tpu_custom_call.1} parent=1 // pred_region
      _
    $region13: #{tpu_custom_call.1} parent=1 // pred_fallthru
      _
    // Predicated region
    $region14: #{tpu_custom_call.1} parent=1 // pred_check
      _
    $region15: #{tpu_custom_call.1} parent=1 // pred_check_branch
      %24 = sbr.rel (0) target = $region17
    $region16: #{tpu_custom_call.1} parent=1 // pred_region
      _
    $region17: #{tpu_custom_call.1} parent=1 // pred_fallthru
      _
    // Predicated region
    $region18: #{tpu_custom_call.1} parent=1 // pred_check
      _
    $region19: #{tpu_custom_call.1} parent=1 // pred_check_branch
      %26 = sbr.rel (0) target = $region21
    $region20: #{tpu_custom_call.1} parent=1 // pred_region
      _
    $region21: #{tpu_custom_call.1} parent=1 // pred_fallthru
      _
    // Predicated region
    $region22: #{tpu_custom_call.1} parent=1 // pred_check
      _
    $region23: #{tpu_custom_call.1} parent=1 // pred_check_branch
      %28 = sbr.rel (0) target = $region25
    $region24: #{tpu_custom_call.1} parent=1 // pred_region
      _
    $region25: #{tpu_custom_call.1} parent=1 // pred_fallthru
      _
    // Predicated region
    $region26: #{tpu_custom_call.1} parent=1 // pred_check
      _
    $region27: #{tpu_custom_call.1} parent=1 // pred_check_branch
      %30 = sbr.rel (0) target = $region29
    $region28: #{tpu_custom_call.1} parent=1 // pred_region
      _
    $region29: #{tpu_custom_call.1} parent=1 // pred_fallthru
      _
    // Predicated region
    $region30: #{tpu_custom_call.1} parent=1 // pred_check
      _
    $region31: #{tpu_custom_call.1} parent=1 // pred_check_branch
      %32 = sbr.rel (0) target = $region33
    $region32: #{tpu_custom_call.1} parent=1 // pred_region
      _
    $region33: #{tpu_custom_call.1} parent=1 // pred_fallthru
      _
    // Predicated region
    $region34: #{tpu_custom_call.1} parent=1 // pred_check
      _
    $region35: #{tpu_custom_call.1} parent=1 // pred_check_branch
      %34 = sbr.rel (0) target = $region37
    $region36: #{tpu_custom_call.1} parent=1 // pred_region
      _
    $region37: #{tpu_custom_call.1} parent=1 // pred_fallthru
      _
    // Predicated region
    $region38: #{tpu_custom_call.1} parent=1 // pred_check
      _
    $region39: #{tpu_custom_call.1} parent=1 // pred_check_branch
      %36 = sbr.rel (0) target = $region41
    $region40: #{tpu_custom_call.1} parent=1 // pred_region
      _
    $region41: #{tpu_custom_call.1} parent=1 // pred_fallthru
      _
    // Predicated region
    $region42: #{tpu_custom_call.1} parent=1 // pred_check
      _
    $region43: #{tpu_custom_call.1} parent=1 // pred_check_branch
      %38 = sbr.rel (0) target = $region45
    $region44: #{tpu_custom_call.1} parent=1 // pred_region
      _
    $region45: #{tpu_custom_call.1} parent=1 // pred_fallthru
      _
    %vm39 = vcmask 261120
    %40 = vst.msk [vmem:[#allocation2] sm:$0xff] %vm39, 0.0
    %41 = vst.msk [vmem:[#allocation2 + $0x8] sm:$0xff] %vm39, 0.0
    %42 = vst.msk [vmem:[#allocation2 + $0x10] sm:$0xff] %vm39, 0.0
    %v43 = vld [vmem:[%s0] sm:$0xf]
    %vm44 = vcmask 257024
    %45 = vst.msk [vmem:[#allocation3] sm:$0xf] %vm44, %v43
    %v46 = vld [vmem:[%s1] sm:$0x1]
    %v47 = vld [vmem:[%s2] sm:$0x1]
    %v48 = vld [vmem:[%s3] sm:$0xf]
    %v49 = vld [vmem:[%s4] sm:$0xf]
    %v50 = vld [vmem:[%s5] sm:$0xf]
    %v51 = vld [vmem:[%s6] sm:$0xf]
    %v52 = vld [vmem:[#allocation3] sm:$0xf]
    %v53 = vsel %vm44, %v52, 0.0
    %54 = vadd.xlane.f32.xlu0 %v53
    %v55 = vpop.xlane.xlu0 %54
    %v56 = vrcp.pop 32.0
    %v57 = vmul.f32 %v55, %v56
    %v58 = vsub.f32 %v52, %v57
    %v59 = vmul.f32 %v58, %v58
    %v60 = vsel %vm44, %v59, 0.0
    %61 = vadd.xlane.f32.xlu0 %v60
    %v62 = vpop.xlane.xlu0 %61
    %v63 = vmul.f32 %v62, %v56
    %v64 = vadd.f32 %v63, 1e-05
    %v65 = vrsqrt.pop %v64
    %v66 = vmul.f32 %v58, %v65
    %68 = vset.pattern.permute.xlu0 0
    %69 = vperm.xlu0 %68, %v48
    %v70 = vpop.permute.xlu0 %69
    %v72 = vmul.f32 %v66, %v70
    %74 = vset.pattern.permute.xlu0 0
    %75 = vperm.xlu0 %74, %v49
    %v76 = vpop.permute.xlu0 %75
    %v78 = vadd.f32 %v72, %v76
    %v79 = vmax.f32 %v78, 0.0
    %vm80 = vcmask 1047808
    %81 = vrot.lane.b32.xlu0 %v79, 32
    %v82 = vpop.permute.xlu0 %81
    %v83 = vsel %vm80, %v82, %v79
    %84 = vrot.lane.b32.xlu0 %v83, 32
    %v85 = vpop.permute.xlu0 %84
    %v86 = vsel %vm80, %v85, %v79
    %v88 = vlaneseq
    %v89 = vshrl.u32 %v88, 7
    %v90 = vsub.s32 0, %v89
    %v91 = vrot.slane %v46, %v90
    %92 = vrot.lane.b32.xlu0 %v91, 31
    %v93 = vpop.permute.xlu0 %92
    %v95 = vmul.f32 %v86, %v93
    %v97 = vlaneseq
    %v98 = vshrl.u32 %v97, 7
    %v99 = vsub.s32 0, %v98
    %v100 = vrot.slane %v47, %v99
    %101 = vrot.lane.b32.xlu0 %v100, 1
    %v102 = vpop.permute.xlu0 %101
    %v104 = vmul.f32 %v86, %v102
    %106 = vrot.lane.b32.xlu0 %v95, 97
    %v107 = vpop.permute.xlu0 %106
    %109 = vst.msk [vmem:[#allocation2] sm:$0xf] %vm44, %v107
    %110 = vst.msk [vmem:[#allocation2 + $0x8] sm:$0xf] %vm44, %v79
    %112 = vrot.lane.b32.xlu0 %v104, 127
    %v113 = vpop.permute.xlu0 %112
    %115 = vst.msk [vmem:[#allocation2 + $0x10] sm:$0xf] %vm44, %v113
    %v116 = vld [vmem:[#allocation2] sm:$0xff]
    %v117 = vld [vmem:[#allocation2 + $0x8] sm:$0xff]
    %v118 = vld [vmem:[#allocation2 + $0x10] sm:$0xff]
    %120 = vset.pattern.permute.xlu0 0
    %121 = vperm.xlu0 %120, %v51
    %v122 = vpop.permute.xlu0 %121
    %vm124 = vcmask 195584
    %v126 = vsel %vm124, %v50, 0
    %128 = vmatprep.subr.mxu0 0.0
    %129 = vmatpush1.msra.mxu0 %v116
    %130 = vmatprep.subr.mxu0 0.0
    %131 = vmatpush1.msra.mxu0 %v117
    %132 = vmatprep.subr.mxu0 0.0
    %133 = vmatpush1.msra.mxu0 %v118
    %134 = vmatprep.subr.mxu0 0.0
    %135 = vmatpush1.msra.mxu0 0.0
    %136 = vmatprep.subr.mxu0 0.0
    %137 = vmatpush1.msra.mxu0 0.0
    %138 = vmatprep.subr.mxu0 0.0
    %139 = vmatpush1.msra.mxu0 0.0
    %140 = vmatprep.subr.mxu0 0.0
    %141 = vmatpush1.msra.mxu0 0.0
    %142 = vmatprep.subr.mxu0 0.0
    %143 = vmatpush1.msra.mxu0 0.0
    %144 = vmatprep.subr.mxu0 0.0
    %145 = vmatpush1.msra.mxu0 0.0
    %146 = vmatprep.subr.mxu0 0.0
    %147 = vmatpush1.msra.mxu0 0.0
    %148 = vmatprep.subr.mxu0 0.0
    %149 = vmatpush1.msra.mxu0 0.0
    %150 = vmatprep.subr.mxu0 0.0
    %151 = vmatpush1.msra.mxu0 0.0
    %152 = vmatprep.subr.mxu0 0.0
    %153 = vmatpush1.msra.mxu0 0.0
    %154 = vmatprep.subr.mxu0 0.0
    %155 = vmatpush1.msra.mxu0 0.0
    %156 = vmatprep.subr.mxu0 0.0
    %157 = vmatpush1.msra.mxu0 0.0
    %158 = vmatprep.subr.mxu0 0.0
    %159 = vmatpush1.msra.mxu0 0.0
    %160 = vmatprep.subr.mxu0 0.0
    %161 = vmatpush1.msra.mxu0 0.0
    %162 = vmatprep.subr.mxu0 0.0
    %163 = vmatpush1.msra.mxu0 0.0
    %164 = vmatprep.subr.mxu0 0.0
    %165 = vmatpush1.msra.mxu0 0.0
    %166 = vmatprep.subr.mxu0 0.0
    %167 = vmatpush1.msra.mxu0 0.0
    %168 = vmatprep.subr.mxu0 0.0
    %169 = vmatpush1.msra.mxu0 0.0
    %170 = vmatprep.subr.mxu0 0.0
    %171 = vmatpush1.msra.mxu0 0.0
    %172 = vmatprep.subr.mxu0 0.0
    %173 = vmatpush1.msra.mxu0 0.0
    %174 = vmatprep.subr.mxu0 0.0
    %175 = vmatpush1.msra.mxu0 0.0
    %176 = vmatprep.subr.mxu0 0.0
    %177 = vmatpush1.msra.mxu0 0.0
    %178 = vmatprep.subr.mxu0 0.0
    %179 = vmatpush1.msra.mxu0 0.0
    %180 = vmatprep.subr.mxu0 0.0
    %181 = vmatpush1.msra.mxu0 0.0
    %182 = vmatprep.subr.mxu0 0.0
    %183 = vmatpush1.msra.mxu0 0.0
    %184 = vmatprep.subr.mxu0 0.0
    %185 = vmatpush1.msra.mxu0 0.0
    %186 = vmatprep.subr.mxu0 0.0
    %187 = vmatpush1.msra.mxu0 0.0
    %188 = vmatprep.subr.mxu0 0.0
    %189 = vmatpush1.msra.mxu0 0.0
    %190 = vmatprep.subr.mxu0 0.0
    %191 = vmatpush1.msra.mxu0 0.0
    %192 = vmatprep.mubr.f32.mxu0 0.0
    %193 = vmatmul.mubr.f32.gmra.mrb[0].mxu0 %v126
    %v194 = vpop.f32.mrb[0].mxu0
    %v195 = vadd.f32 %v122, %v194
    %v196 = vpop.f32.mrb[0].mxu0
    %197 = vdwg.mxu0
    %198 = vst.msk [vmem:[#allocation3 + $0x4] sm:$0xf] %vm44, %v195
    %v199 = vld [vmem:[%s7] sm:$0xff]
    %v200 = vld [vmem:[%s8] sm:$0xff]
    %v201 = vld [vmem:[%s9] sm:$0xf]
    %v202 = vld [vmem:[%s10] sm:$0xf]
    %v203 = vld [vmem:[#allocation3] sm:$0xff]
    %v204 = vsel %vm39, %v203, 0.0
    %205 = vadd.xlane.f32.xlu0 %v204
    %v206 = vpop.xlane.xlu0 %205
    %v207 = vmul.f32 %v206, %v56
    %v208 = vsub.f32 %v203, %v207
    %v209 = vmul.f32 %v208, %v208
    %v210 = vsel %vm39, %v209, 0.0
    %211 = vadd.xlane.f32.xlu0 %v210
    %v212 = vpop.xlane.xlu0 %211
    %v213 = vmul.f32 %v212, %v56
    %v214 = vadd.f32 %v213, 1e-05
    %v215 = vrsqrt.pop %v214
    %v216 = vmul.f32 %v208, %v215
    %218 = vset.pattern.permute.xlu0 0
    %219 = vperm.xlu0 %218, %v199
    %v220 = vpop.permute.xlu0 %219
    %v222 = vmul.f32 %v216, %v220
    %224 = vset.pattern.permute.xlu0 0
    %225 = vperm.xlu0 %224, %v200
    %v226 = vpop.permute.xlu0 %225
    %v228 = vadd.f32 %v222, %v226
    %v229 = vmax.f32 %v228, 0.0
    %230 = vrot.lane.b32.xlu0 %v229, 32
    %v231 = vpop.permute.xlu0 %230
    %v232 = vsel %vm80, %v231, %v229
    %233 = vrot.lane.b32.xlu0 %v232, 32
    %v234 = vpop.permute.xlu0 %233
    %v235 = vsel %vm80, %v234, %v229
    %v236 = vmul.f32 %v235, %v93
    %v237 = vmul.f32 %v235, %v102
    %239 = vrot.lane.b32.xlu0 %v236, 97
    %v240 = vpop.permute.xlu0 %239
    %242 = vst.msk [vmem:[#allocation2] sm:$0xff] %vm39, %v240
    %243 = vst.msk [vmem:[#allocation2 + $0x8] sm:$0xff] %vm39, %v229
    %245 = vrot.lane.b32.xlu0 %v237, 127
    %v246 = vpop.permute.xlu0 %245
    %248 = vst.msk [vmem:[#allocation2 + $0x10] sm:$0xff] %vm39, %v246
    %v249 = vld [vmem:[#allocation2] sm:$0xff]
    %v250 = vld [vmem:[#allocation2 + $0x8] sm:$0xff]
    %v251 = vld [vmem:[#allocation2 + $0x10] sm:$0xff]
    %253 = vset.pattern.permute.xlu0 0
    %254 = vperm.xlu0 %253, %v202
    %v255 = vpop.permute.xlu0 %254
    %v258 = vsel %vm124, %v201, 0
    %260 = vmatprep.subr.mxu0 0.0
    %261 = vmatpush1.msra.mxu0 %v249
    %262 = vmatprep.subr.mxu0 0.0
    %263 = vmatpush1.msra.mxu0 %v250
    %264 = vmatprep.subr.mxu0 0.0
    %265 = vmatpush1.msra.mxu0 %v251
    %266 = vmatprep.subr.mxu0 0.0
    %267 = vmatpush1.msra.mxu0 0.0
    %268 = vmatprep.subr.mxu0 0.0
    %269 = vmatpush1.msra.mxu0 0.0
    %270 = vmatprep.subr.mxu0 0.0
    %271 = vmatpush1.msra.mxu0 0.0
    %272 = vmatprep.subr.mxu0 0.0
    %273 = vmatpush1.msra.mxu0 0.0
    %274 = vmatprep.subr.mxu0 0.0
    %275 = vmatpush1.msra.mxu0 0.0
    %276 = vmatprep.subr.mxu0 0.0
    %277 = vmatpush1.msra.mxu0 0.0
    %278 = vmatprep.subr.mxu0 0.0
    %279 = vmatpush1.msra.mxu0 0.0
    %280 = vmatprep.subr.mxu0 0.0
    %281 = vmatpush1.msra.mxu0 0.0
    %282 = vmatprep.subr.mxu0 0.0
    %283 = vmatpush1.msra.mxu0 0.0
    %284 = vmatprep.subr.mxu0 0.0
    %285 = vmatpush1.msra.mxu0 0.0
    %286 = vmatprep.subr.mxu0 0.0
    %287 = vmatpush1.msra.mxu0 0.0
    %288 = vmatprep.subr.mxu0 0.0
    %289 = vmatpush1.msra.mxu0 0.0
    %290 = vmatprep.subr.mxu0 0.0
    %291 = vmatpush1.msra.mxu0 0.0
    %292 = vmatprep.subr.mxu0 0.0
    %293 = vmatpush1.msra.mxu0 0.0
    %294 = vmatprep.subr.mxu0 0.0
    %295 = vmatpush1.msra.mxu0 0.0
    %296 = vmatprep.subr.mxu0 0.0
    %297 = vmatpush1.msra.mxu0 0.0
    %298 = vmatprep.subr.mxu0 0.0
    %299 = vmatpush1.msra.mxu0 0.0
    %300 = vmatprep.subr.mxu0 0.0
    %301 = vmatpush1.msra.mxu0 0.0
    %302 = vmatprep.subr.mxu0 0.0
    %303 = vmatpush1.msra.mxu0 0.0
    %304 = vmatprep.subr.mxu0 0.0
    %305 = vmatpush1.msra.mxu0 0.0
    %306 = vmatprep.subr.mxu0 0.0
    %307 = vmatpush1.msra.mxu0 0.0
    %308 = vmatprep.subr.mxu0 0.0
    %309 = vmatpush1.msra.mxu0 0.0
    %310 = vmatprep.subr.mxu0 0.0
    %311 = vmatpush1.msra.mxu0 0.0
    %312 = vmatprep.subr.mxu0 0.0
    %313 = vmatpush1.msra.mxu0 0.0
    %314 = vmatprep.subr.mxu0 0.0
    %315 = vmatpush1.msra.mxu0 0.0
    %316 = vmatprep.subr.mxu0 0.0
    %317 = vmatpush1.msra.mxu0 0.0
    %318 = vmatprep.subr.mxu0 0.0
    %319 = vmatpush1.msra.mxu0 0.0
    %320 = vmatprep.subr.mxu0 0.0
    %321 = vmatpush1.msra.mxu0 0.0
    %322 = vmatprep.subr.mxu0 0.0
    %323 = vmatpush1.msra.mxu0 0.0
    %324 = vmatprep.mubr.f32.mxu0 0.0
    %325 = vmatmul.mubr.f32.gmra.mrb[0].mxu0 %v258
    %v326 = vpop.f32.mrb[0].mxu0
    %v327 = vadd.f32 %v255, %v326
    %v328 = vpop.f32.mrb[0].mxu0
    %329 = vdwg.mxu0
    %330 = vst.msk [vmem:[#allocation3 + $0x8] sm:$0xf] %vm44, %v327
    // Predicated region
    $region46: #{tpu_custom_call.1} parent=1 // pred_check
      _
    $region47: #{tpu_custom_call.1} parent=1 // pred_check_branch
      %332 = sbr.rel (0) target = $region49
    $region48: #{tpu_custom_call.1} parent=1 // pred_region
      %s334 = ssub.s32 256, 256
      %335 = vsyncadd [#allocation4], %s334
      %s336 = sshll.u32 [#allocation3], 4
      %s337 = int_to_ptr.vmem [resolvable:$true] %s336
      %342 = dma.vmem_to_hbm [thread:$0]  %s337, 256, %s11, [#allocation4], 128, 128, 8
    $region49: #{tpu_custom_call.1} parent=1 // pred_fallthru
      _
    // Predicated region
    $region50: #{tpu_custom_call.1} parent=1 // pred_check
      _
    $region51: #{tpu_custom_call.1} parent=1 // pred_check_branch
      %344 = sbr.rel (0) target = $region53
    $region52: #{tpu_custom_call.1} parent=1 // pred_region
      %345 = dma.done [#allocation4], 256
    $region53: #{tpu_custom_call.1} parent=1 // pred_fallthru
      _
    %346 = vsyncpa [#allocation4], 1

</llo_original>
